<compile_context>
chip_gen: v7x
topology: tpu7x:2x2x1
jax: 0.10.0
libtpu: 0.0.40
codegen_flags: <defaults>
</compile_context>

<pallas_src>
import math
from functools import partial

import jax
import jax.numpy as jnp
from jax.experimental import pallas as pl
from jax.experimental.pallas import tpu as pltpu


# ----------------------------- fused kernel -----------------------------

def _cross_attention_kernel(q_ref, x_ref, wq_ref, wkv_ref, linw_ref, linb_ref,
                            o_ref, *, residual_coef, eps):
    """Fused CrossAttention forward for the whole batch.

    q_ref, x_ref : (B, S, D) f32    wq_ref : (D, D) bf16    wkv_ref : (D, 2D) bf16
    linw_ref     : (S*D, R) bf16    linb_ref : (1, R) f32   o_ref   : (B, R) f32
    """
    q_in = q_ref[...]                                    # (B, S, D) f32
    x_in = x_ref[...]                                    # (B, S, D) f32
    B, S, D = x_in.shape

    # Q / K / V projections for every (batch, seq) row at once; K and V share one matmul.
    qf = q_in.reshape(B * S, D).astype(jnp.bfloat16)
    xf = x_in.reshape(B * S, D).astype(jnp.bfloat16)
    Q = jnp.dot(qf, wq_ref[...], preferred_element_type=jnp.float32)     # (B*S, D)
    KV = jnp.dot(xf, wkv_ref[...], preferred_element_type=jnp.float32)   # (B*S, 2D)
    Qb = Q.astype(jnp.bfloat16).reshape(B, S, D)
    Kb = KV[:, :D].astype(jnp.bfloat16).reshape(B, S, D)
    Vb = KV[:, D:].astype(jnp.bfloat16).reshape(B, S, D)

    # Scaled dot-product attention; softmax normalization deferred past the PV matmul.
    scores = jnp.einsum('bqd,bkd->bqk', Qb, Kb,
                        preferred_element_type=jnp.float32) * (1.0 / math.sqrt(D))
    m = jnp.max(scores, axis=-1, keepdims=True)
    e = jnp.exp(scores - m)                                              # (B, S, S) f32
    ctx_un = jnp.einsum('bqk,bkd->bqd', e.astype(jnp.bfloat16), Vb,
                        preferred_element_type=jnp.float32)              # (B, S, D)
    denom = jnp.sum(e, axis=-1, keepdims=True)                           # (B, S, 1)
    ctx = ctx_un * pl.reciprocal(denom, approx=True)

    # Residual against the key/value input x (as in the torch module) + TF-style LayerNorm.
    # One-pass statistics; the LN affine is already folded into lin_w / lin_b.
    h = ctx + residual_coef * x_in
    mean = jnp.mean(h, axis=-1, keepdims=True)
    mean_sq = jnp.mean(h * h, axis=-1, keepdims=True)
    var = mean_sq - mean * mean
    hn = (h - mean) * jax.lax.rsqrt(var + eps)

    # Final projection once over the whole batch: (B, S*D) @ (S*D, R).
    flat = hn.reshape(B, S * D).astype(jnp.bfloat16)     # torch .view(B, -1), row-major
    y = jnp.dot(flat, linw_ref[...], preferred_element_type=jnp.float32) + linb_ref[...]

    # Dropout is identity at inference; Swish epilogue (x * sigmoid(x)).
    o_ref[...] = y * jax.nn.sigmoid(y)


def cross_attention(q, x, folded_params, *, residual_coef=0.5, eps=1e-12):
    B, S, D = x.shape
    SD, R = folded_params["lin_w"].shape
    assert q.shape == x.shape and SD == S * D

    kernel = partial(_cross_attention_kernel, residual_coef=residual_coef, eps=eps)
    vmem = pl.BlockSpec(memory_space=pltpu.MemorySpace.VMEM)

    flops = 2 * (B * S * D * D            # Q projection
                 + B * S * D * (2 * D)    # packed K/V projection
                 + 2 * B * S * S * D      # QK^T and PV
                 + B * S * D * R)         # final projection
    transcendentals = B * S * S + 2 * B * S + B * R   # exp, reciprocal/rsqrt, sigmoid
    bytes_accessed = (4 * 2 * B * S * D                     # q, x
                      + 2 * (D * D + D * 2 * D + SD * R)    # bf16 weights
                      + 4 * R + 4 * B * R)                  # bias + output

    return pl.pallas_call(
        kernel,
        out_shape=jax.ShapeDtypeStruct((B, R), jnp.float32),
        in_specs=[vmem] * 6,
        out_specs=vmem,
        cost_estimate=pl.CostEstimate(flops=flops,
                                      transcendentals=transcendentals,
                                      bytes_accessed=bytes_accessed),
    )(q, x,
      folded_params["wq"], folded_params["w_kv"],
      folded_params["lin_w"], folded_params["lin_b"])


# ----------------------------- init-time constant folds -----------------------------

def fold_cross_attention_params(params):
    """One-time, init-time folds (NOT per-call wrapper ops):
      * LayerNorm affine folded into the final linear weight/bias.
      * WK / WV packed into a single (D, 2D) weight.
      * MXU-side weights stored in bfloat16.
    """
    D = params["wq"].shape[0]
    SD, R = params["lin_w"].shape
    S = SD // D
    lin_w = (params["lin_w"].reshape(S, D, R) * params["ln_w"][None, :, None]).reshape(SD, R)
    lin_b = params["lin_b"] + jnp.tile(params["ln_b"], S) @ params["lin_w"]
    return dict(
        wq=params["wq"].astype(jnp.bfloat16),
        w_kv=jnp.concatenate([params["wk"], params["wv"]], axis=1).astype(jnp.bfloat16),
        lin_w=lin_w.astype(jnp.bfloat16),
        lin_b=lin_b.reshape(1, R).astype(jnp.float32),
    )


# ----------------------------- pure-JAX reference -----------------------------

def cross_attention_reference(q, x, params, *, residual_coef=0.5, eps=1e-12):
    B, S, D = x.shape
    Q = q @ params["wq"]
    K = x @ params["wk"]
    V = x @ params["wv"]
    scores = jnp.einsum('bqd,bkd->bqk', Q, K) / math.sqrt(D)
    attn = jax.nn.softmax(scores, axis=-1)
    ctx = jnp.einsum('bqk,bkd->bqd', attn, V)
    h = ctx + residual_coef * x
    u = jnp.mean(h, axis=-1, keepdims=True)
    s = jnp.mean((h - u) ** 2, axis=-1, keepdims=True)
    h = params["ln_w"] * ((h - u) / jnp.sqrt(s + eps)) + params["ln_b"]
    y = h.reshape(B, S * D) @ params["lin_w"] + params["lin_b"]
    return y * jax.nn.sigmoid(y)


# ----------------------------- parameter construction -----------------------------

def init_cross_attention_params(key, query_dim, seq_len, return_dim):
    def xavier(k, shape):
        fan_in, fan_out = shape
        lim = math.sqrt(6.0 / (fan_in + fan_out))
        return jax.random.uniform(k, shape, jnp.float32, -lim, lim)

    ks = jax.random.split(key, 5)
    lin_in = seq_len * query_dim
    lim = 1.0 / math.sqrt(lin_in)
    return dict(
        wq=xavier(ks[0], (query_dim, query_dim)),
        wk=xavier(ks[1], (query_dim, query_dim)),
        wv=xavier(ks[2], (query_dim, query_dim)),
        ln_w=jnp.ones((query_dim,), jnp.float32),
        ln_b=jnp.zeros((query_dim,), jnp.float32),
        lin_w=jax.random.uniform(ks[3], (lin_in, return_dim), jnp.float32, -lim, lim),
        lin_b=jax.random.uniform(ks[4], (return_dim,), jnp.float32, -lim, lim),
    )


# ----------------------------- main -----------------------------

if __name__ == "__main__":
    key = jax.random.PRNGKey(0)
    k_p, k_q, k_x = jax.random.split(key, 3)

    B, S, D, R = 2, 16, 32, 64          # batch, seq_length, query_dim, return_dim
    params = init_cross_attention_params(k_p, query_dim=D, seq_len=S, return_dim=R)
    folded = fold_cross_attention_params(params)       # one-time init-style fold
    q = jax.random.normal(k_q, (B, S, D), jnp.float32)
    x = jax.random.normal(k_x, (B, S, D), jnp.float32)

    out = cross_attention(q, x, folded, residual_coef=0.5)
    jax.block_until_ready(out)

    assert out.shape == (B, R)
    assert bool(jnp.all(jnp.isfinite(out)))
    ref = cross_attention_reference(q, x, params, residual_coef=0.5)
    assert jnp.allclose(out, ref, atol=5e-2, rtol=5e-2), float(jnp.max(jnp.abs(out - ref)))

    print("KERNEL_OK")
</pallas_src>

<mosaic_0001>
module attributes {stable_mosaic.version = 11 : i64} {
  func.func @_cross_attention_kernel(%arg0: memref<2x16x32xf32, #tpu.memory_space<vmem>>, %arg1: memref<2x16x32xf32, #tpu.memory_space<vmem>>, %arg2: memref<32x32xbf16, #tpu.memory_space<vmem>>, %arg3: memref<32x64xbf16, #tpu.memory_space<vmem>>, %arg4: memref<512x64xbf16, #tpu.memory_space<vmem>>, %arg5: memref<1x64xf32, #tpu.memory_space<vmem>>, %arg6: memref<2x64xf32, #tpu.memory_space<vmem>>) attributes {dimension_semantics = [], scalar_prefetch = 0 : i64, scratch_operands = 0 : i64, tpu.core_type = #tpu.core_type<tc>} {
    %c0 = arith.constant 0 : index
    %c0_0 = arith.constant 0 : index
    %c0_1 = arith.constant 0 : index
    %0 = vector.load %arg0[%c0, %c0_0, %c0_1] : memref<2x16x32xf32, #tpu.memory_space<vmem>>, vector<2x16x32xf32>
    %c0_2 = arith.constant 0 : index
    %c0_3 = arith.constant 0 : index
    %c0_4 = arith.constant 0 : index
    %1 = vector.load %arg1[%c0_2, %c0_3, %c0_4] : memref<2x16x32xf32, #tpu.memory_space<vmem>>, vector<2x16x32xf32>
    %2 = vector.shape_cast %0 : vector<2x16x32xf32> to vector<32x32xf32>
    %3 = arith.truncf %2 : vector<32x32xf32> to vector<32x32xbf16>
    %4 = vector.shape_cast %1 : vector<2x16x32xf32> to vector<32x32xf32>
    %5 = arith.truncf %4 : vector<32x32xf32> to vector<32x32xbf16>
    %c0_5 = arith.constant 0 : index
    %c0_6 = arith.constant 0 : index
    %6 = vector.load %arg2[%c0_5, %c0_6] : memref<32x32xbf16, #tpu.memory_space<vmem>>, vector<32x32xbf16>
    %cst = arith.constant dense<0.000000e+00> : vector<32x32xf32>
    %7 = tpu.matmul %3, %6, %cst {dimension_numbers = #tpu.dot_dimension_numbers<[1], [0], [0], [1], [0, 0, 1, 1], [], []>} : vector<32x32xbf16>, vector<32x32xbf16>, vector<32x32xf32> -> vector<32x32xf32>
    %c0_7 = arith.constant 0 : index
    %c0_8 = arith.constant 0 : index
    %8 = vector.load %arg3[%c0_7, %c0_8] : memref<32x64xbf16, #tpu.memory_space<vmem>>, vector<32x64xbf16>
    %cst_9 = arith.constant dense<0.000000e+00> : vector<32x64xf32>
    %9 = tpu.matmul %5, %8, %cst_9 {dimension_numbers = #tpu.dot_dimension_numbers<[1], [0], [0], [1], [0, 0, 1, 1], [], []>} : vector<32x32xbf16>, vector<32x64xbf16>, vector<32x64xf32> -> vector<32x64xf32>
    %10 = arith.truncf %7 : vector<32x32xf32> to vector<32x32xbf16>
    %11 = vector.shape_cast %10 : vector<32x32xbf16> to vector<2x16x32xbf16>
    %12 = vector.extract_strided_slice %9 {offsets = [0, 0], sizes = [32, 32], strides = [1, 1]} : vector<32x64xf32> to vector<32x32xf32>
    %13 = arith.truncf %12 : vector<32x32xf32> to vector<32x32xbf16>
    %14 = vector.shape_cast %13 : vector<32x32xbf16> to vector<2x16x32xbf16>
    %15 = vector.extract_strided_slice %9 {offsets = [0, 32], sizes = [32, 32], strides = [1, 1]} : vector<32x64xf32> to vector<32x32xf32>
    %16 = arith.truncf %15 : vector<32x32xf32> to vector<32x32xbf16>
    %17 = vector.shape_cast %16 : vector<32x32xbf16> to vector<2x16x32xbf16>
    "tpu.trace_start"() <{level = 10 : i32, message = "bqd,bkd->bqk"}> : () -> ()
    %cst_10 = arith.constant dense<0.000000e+00> : vector<2x16x16xf32>
    %18 = tpu.matmul %11, %14, %cst_10 {dimension_numbers = #tpu.dot_dimension_numbers<[2], [2], [1], [1], [0, 0, 0, 1, 1, 1], [0], [0]>} : vector<2x16x32xbf16>, vector<2x16x32xbf16>, vector<2x16x16xf32> -> vector<2x16x16xf32>
    "tpu.trace_stop"() : () -> ()
    %cst_11 = arith.constant 0.176776692 : f32
    %19 = vector.broadcast %cst_11 : f32 to vector<2x16x16xf32>
    %20 = arith.mulf %18, %19 : vector<2x16x16xf32>
    %cst_12 = arith.constant dense<0xFF800000> : vector<2x16xf32>
    %21 = vector.multi_reduction <maximumf>, %20, %cst_12 [2] : vector<2x16x16xf32> to vector<2x16xf32>
    %22 = vector.shape_cast %21 : vector<2x16xf32> to vector<2x16x1xf32>
    %23 = vector.broadcast %22 : vector<2x16x1xf32> to vector<2x16x16xf32>
    %24 = arith.subf %20, %23 : vector<2x16x16xf32>
    %25 = math.exp %24 : vector<2x16x16xf32>
    %26 = arith.truncf %25 : vector<2x16x16xf32> to vector<2x16x16xbf16>
    "tpu.trace_start"() <{level = 10 : i32, message = "bqk,bkd->bqd"}> : () -> ()
    %cst_13 = arith.constant dense<0.000000e+00> : vector<2x16x32xf32>
    %27 = tpu.matmul %26, %17, %cst_13 {dimension_numbers = #tpu.dot_dimension_numbers<[2], [1], [1], [2], [0, 0, 0, 1, 1, 2], [0], [0]>} : vector<2x16x16xbf16>, vector<2x16x32xbf16>, vector<2x16x32xf32> -> vector<2x16x32xf32>
    "tpu.trace_stop"() : () -> ()
    %cst_14 = arith.constant dense<0.000000e+00> : vector<2x16xf32>
    %28 = vector.multi_reduction <add>, %25, %cst_14 [2] : vector<2x16x16xf32> to vector<2x16xf32>
    %29 = vector.shape_cast %28 : vector<2x16xf32> to vector<2x16x1xf32>
    %30 = tpu.reciprocal %29 {approx = true} : vector<2x16x1xf32> -> vector<2x16x1xf32>
    %31 = vector.broadcast %30 : vector<2x16x1xf32> to vector<2x16x32xf32>
    %32 = arith.mulf %27, %31 : vector<2x16x32xf32>
    %cst_15 = arith.constant 5.000000e-01 : f32
    %33 = vector.broadcast %cst_15 : f32 to vector<2x16x32xf32>
    %34 = arith.mulf %33, %1 : vector<2x16x32xf32>
    %35 = arith.addf %32, %34 : vector<2x16x32xf32>
    %cst_16 = arith.constant dense<0.000000e+00> : vector<2x16xf32>
    %36 = vector.multi_reduction <add>, %35, %cst_16 [2] : vector<2x16x32xf32> to vector<2x16xf32>
    %37 = vector.shape_cast %36 : vector<2x16xf32> to vector<2x16x1xf32>
    %cst_17 = arith.constant 3.200000e+01 : f32
    %38 = vector.broadcast %cst_17 : f32 to vector<2x16x1xf32>
    %39 = arith.divf %37, %38 : vector<2x16x1xf32>
    %40 = arith.mulf %35, %35 : vector<2x16x32xf32>
    %cst_18 = arith.constant dense<0.000000e+00> : vector<2x16xf32>
    %41 = vector.multi_reduction <add>, %40, %cst_18 [2] : vector<2x16x32xf32> to vector<2x16xf32>
    %42 = vector.shape_cast %41 : vector<2x16xf32> to vector<2x16x1xf32>
    %cst_19 = arith.constant 3.200000e+01 : f32
    %43 = vector.broadcast %cst_19 : f32 to vector<2x16x1xf32>
    %44 = arith.divf %42, %43 : vector<2x16x1xf32>
    %45 = arith.mulf %39, %39 : vector<2x16x1xf32>
    %46 = arith.subf %44, %45 : vector<2x16x1xf32>
    %47 = vector.broadcast %39 : vector<2x16x1xf32> to vector<2x16x32xf32>
    %48 = arith.subf %35, %47 : vector<2x16x32xf32>
    %cst_20 = arith.constant 9.99999996E-13 : f32
    %49 = vector.broadcast %cst_20 : f32 to vector<2x16x1xf32>
    %50 = arith.addf %46, %49 : vector<2x16x1xf32>
    %51 = math.rsqrt %50 : vector<2x16x1xf32>
    %52 = vector.broadcast %51 : vector<2x16x1xf32> to vector<2x16x32xf32>
    %53 = arith.mulf %48, %52 : vector<2x16x32xf32>
    %54 = vector.shape_cast %53 : vector<2x16x32xf32> to vector<2x512xf32>
    %55 = arith.truncf %54 : vector<2x512xf32> to vector<2x512xbf16>
    %c0_21 = arith.constant 0 : index
    %c0_22 = arith.constant 0 : index
    %56 = vector.load %arg4[%c0_21, %c0_22] : memref<512x64xbf16, #tpu.memory_space<vmem>>, vector<512x64xbf16>
    %cst_23 = arith.constant dense<0.000000e+00> : vector<2x64xf32>
    %57 = tpu.matmul %55, %56, %cst_23 {dimension_numbers = #tpu.dot_dimension_numbers<[1], [0], [0], [1], [0, 0, 1, 1], [], []>} : vector<2x512xbf16>, vector<512x64xbf16>, vector<2x64xf32> -> vector<2x64xf32>
    %c0_24 = arith.constant 0 : index
    %c0_25 = arith.constant 0 : index
    %58 = vector.load %arg5[%c0_24, %c0_25] : memref<1x64xf32, #tpu.memory_space<vmem>>, vector<1x64xf32>
    %59 = vector.broadcast %58 : vector<1x64xf32> to vector<2x64xf32>
    %60 = arith.addf %57, %59 : vector<2x64xf32>
    %61 = arith.negf %60 : vector<2x64xf32>
    %62 = math.exp %61 : vector<2x64xf32>
    %cst_26 = arith.constant 1.000000e+00 : f32
    %63 = vector.broadcast %cst_26 : f32 to vector<2x64xf32>
    %64 = arith.addf %63, %62 : vector<2x64xf32>
    %65 = arith.divf %63, %64 : vector<2x64xf32>
    %66 = arith.mulf %60, %65 : vector<2x64xf32>
    %c0_27 = arith.constant 0 : index
    %c0_28 = arith.constant 0 : index
    %67 = vector.load %arg6[%c0_27, %c0_28] : memref<2x64xf32, #tpu.memory_space<vmem>>, vector<2x64xf32>
    tpu.vector_store %arg6[%c0_27, %c0_28], %66 {strides = array<i32>} : memref<2x64xf32, #tpu.memory_space<vmem>>, vector<2x64xf32>,
    return
  }
}

</mosaic_0001>

<llo_original>
// kernel: tpu_custom_call.1
$region0: #{tpu_custom_call.1}
  #allocation0 [shape = 'u32[]', space=smem, size = 0x4, offset = 0x4, fixed_abs, tag = 'smem constant byte address 0x4 - core index']
  #allocation1 [shape = 'u32[144,128]{1,0:T(1,128)}', space=vmem, size = 0x12000, scoped, tag = 'internal scratch']
  %s0 = inlined_call_operand.vmem [shape: f32[2,16,32], index: 0, kind: input, shape index: {}]
  %s1 = inlined_call_operand.vmem [shape: f32[2,16,32], index: 1, kind: input, shape index: {}]
  %s2 = inlined_call_operand.vmem [shape: bf16[32,32], index: 2, kind: input, shape index: {}]
  %s3 = inlined_call_operand.vmem [shape: bf16[32,64], index: 3, kind: input, shape index: {}]
  %s4 = inlined_call_operand.vmem [shape: bf16[512,64], index: 4, kind: input, shape index: {}]
  %s5 = inlined_call_operand.vmem [shape: f32[1,64], index: 5, kind: input, shape index: {}]
  %s6 = inlined_call_operand.hbm [shape: f32[2,64], index: 6, kind: output, shape index: {}]
  %s7 = sld [smem:[#allocation0]]
  $region34: #{tpu_custom_call.1} parent=0
    _
  %s9 = ssub.s32 1, %s7
  %s10 = scalar_select 0, %s9, %s7
  $region1: #{tpu_custom_call.1} parent=0
    #allocation2 [shape = 'u8[1024]{0}', space=vmem, size = 0x400, scoped, tag = 'output window, operand 0, single buffered']
    #allocation3 [shape = 's32[1]{0}', space=sflag, size = 0x4, scoped, tag = 'scoped memory for tpu_custom_call.1']
    %11 = vsyncpa [#allocation3], 0
    // Predicated region
    $region2: #{tpu_custom_call.1} parent=1 // pred_check
      _
    $region3: #{tpu_custom_call.1} parent=1 // pred_check_branch
      %13 = sbr.rel (0) target = $region5
    $region4: #{tpu_custom_call.1} parent=1 // pred_region
      _
    $region5: #{tpu_custom_call.1} parent=1 // pred_fallthru
      _
    // Predicated region
    $region6: #{tpu_custom_call.1} parent=1 // pred_check
      _
    $region7: #{tpu_custom_call.1} parent=1 // pred_check_branch
      %15 = sbr.rel (0) target = $region9
    $region8: #{tpu_custom_call.1} parent=1 // pred_region
      _
    $region9: #{tpu_custom_call.1} parent=1 // pred_fallthru
      _
    // Predicated region
    $region10: #{tpu_custom_call.1} parent=1 // pred_check
      _
    $region11: #{tpu_custom_call.1} parent=1 // pred_check_branch
      %17 = sbr.rel (0) target = $region13
    $region12: #{tpu_custom_call.1} parent=1 // pred_region
      _
    $region13: #{tpu_custom_call.1} parent=1 // pred_fallthru
      _
    // Predicated region
    $region14: #{tpu_custom_call.1} parent=1 // pred_check
      _
    $region15: #{tpu_custom_call.1} parent=1 // pred_check_branch
      %19 = sbr.rel (0) target = $region17
    $region16: #{tpu_custom_call.1} parent=1 // pred_region
      _
    $region17: #{tpu_custom_call.1} parent=1 // pred_fallthru
      _
    // Predicated region
    $region18: #{tpu_custom_call.1} parent=1 // pred_check
      _
    $region19: #{tpu_custom_call.1} parent=1 // pred_check_branch
      %21 = sbr.rel (0) target = $region21
    $region20: #{tpu_custom_call.1} parent=1 // pred_region
      _
    $region21: #{tpu_custom_call.1} parent=1 // pred_fallthru
      _
    // Predicated region
    $region22: #{tpu_custom_call.1} parent=1 // pred_check
      _
    $region23: #{tpu_custom_call.1} parent=1 // pred_check_branch
      %23 = sbr.rel (0) target = $region25
    $region24: #{tpu_custom_call.1} parent=1 // pred_region
      _
    $region25: #{tpu_custom_call.1} parent=1 // pred_fallthru
      _
    %v25 = vld [vmem:[%s0] sm:$0xff]
    %v26 = vld [vmem:[%s0 + $0x8] sm:$0xff]
    %v27 = vld [vmem:[%s0 + $0x10] sm:$0xff]
    %v28 = vld [vmem:[%s0 + $0x18] sm:$0xff]
    %v29 = vld [vmem:[%s1] sm:$0xff]
    %v30 = vld [vmem:[%s1 + $0x8] sm:$0xff]
    %v31 = vld [vmem:[%s1 + $0x10] sm:$0xff]
    %v32 = vld [vmem:[%s1 + $0x18] sm:$0xff]
    %v33 = vpack.c.bf16 %v26, %v25
    %v34 = vpack.c.bf16 %v28, %v27
    %v35 = vpack.c.bf16 %v30, %v29
    %v36 = vpack.c.bf16 %v32, %v31
    %v37 = vld [vmem:[%s2] sm:$0xf]
    %v38 = vld [vmem:[%s2 + $0x4] sm:$0xf]
    %v39 = vld [vmem:[%s2 + $0x8] sm:$0xf]
    %v40 = vld [vmem:[%s2 + $0xc] sm:$0xf]
    %v45 = vunpack.c.l.b16 %v37
    %v46 = vunpack.c.l.b16 %v38
    %v47 = vunpack.c.l.b16 %v39
    %v48 = vunpack.c.l.b16 %v40
    %v49 = vpack.c.b16 %v46, %v45
    %v50 = vpack.c.b16 %v48, %v47
    %vm53 = vcmask 261120
    %v55 = vsel %vm53, %v33, 0
    %v58 = vsel %vm53, %v34, 0
    %60 = vmatprep.subr.bf16.mxu0 0
    %61 = vmatpush1.bf16.msra.mxu0 %v49
    %62 = vmatprep.subr.bf16.mxu0 0
    %63 = vmatpush1.bf16.msra.mxu0 %v50
    %64 = vmatprep.subr.bf16.mxu0 0
    %65 = vmatpush1.bf16.msra.mxu0 0
    %66 = vmatprep.subr.bf16.mxu0 0
    %67 = vmatpush1.bf16.msra.mxu0 0
    %68 = vmatprep.subr.bf16.mxu0 0
    %69 = vmatpush1.bf16.msra.mxu0 0
    %70 = vmatprep.subr.bf16.mxu0 0
    %71 = vmatpush1.bf16.msra.mxu0 0
    %72 = vmatprep.subr.bf16.mxu0 0
    %73 = vmatpush1.bf16.msra.mxu0 0
    %74 = vmatprep.subr.bf16.mxu0 0
    %75 = vmatpush1.bf16.msra.mxu0 0
    %76 = vmatprep.subr.bf16.mxu0 0
    %77 = vmatpush1.bf16.msra.mxu0 0
    %78 = vmatprep.subr.bf16.mxu0 0
    %79 = vmatpush1.bf16.msra.mxu0 0
    %80 = vmatprep.subr.bf16.mxu0 0
    %81 = vmatpush1.bf16.msra.mxu0 0
    %82 = vmatprep.subr.bf16.mxu0 0
    %83 = vmatpush1.bf16.msra.mxu0 0
    %84 = vmatprep.subr.bf16.mxu0 0
    %85 = vmatpush1.bf16.msra.mxu0 0
    %86 = vmatprep.subr.bf16.mxu0 0
    %87 = vmatpush1.bf16.msra.mxu0 0
    %88 = vmatprep.subr.bf16.mxu0 0
    %89 = vmatpush1.bf16.msra.mxu0 0
    %90 = vmatprep.subr.bf16.mxu0 0
    %91 = vmatpush1.bf16.msra.mxu0 0
    %92 = vmatprep.mubr.bf16.mxu0 0
    %93 = vmatmul.mubr.bf16.gmra.mrb[0].mxu0 %v55
    %v94 = vpop.f32.mrb[0].mxu0
    %v95 = vadd.f32 0.0, %v94
    %v96 = vpop.f32.mrb[0].mxu0
    %v97 = vpop.f32.mrb[0].mxu0
    %v98 = vadd.f32 0.0, %v97
    %v99 = vpop.f32.mrb[0].mxu0
    %100 = vmatprep.mubr.bf16.mxu0 0
    %101 = vmatmul.mubr.bf16.gmra.mrb[0].mxu0 %v58
    %v102 = vpop.f32.mrb[0].mxu0
    %v103 = vadd.f32 0.0, %v102
    %v104 = vpop.f32.mrb[0].mxu0
    %v105 = vpop.f32.mrb[0].mxu0
    %v106 = vadd.f32 0.0, %v105
    %v107 = vpop.f32.mrb[0].mxu0
    %108 = vdwg.mxu0
    %v109 = vld [vmem:[%s3] sm:$0xf]
    %v110 = vld [vmem:[%s3 + $0x4] sm:$0xf]
    %v111 = vld [vmem:[%s3 + $0x8] sm:$0xf]
    %v112 = vld [vmem:[%s3 + $0xc] sm:$0xf]
    %v117 = vunpack.c.l.b16 %v109
    %v118 = vunpack.c.l.b16 %v110
    %v119 = vunpack.c.l.b16 %v111
    %v120 = vunpack.c.l.b16 %v112
    %v121 = vpack.c.b16 %v118, %v117
    %v122 = vpack.c.b16 %v120, %v119
    %v126 = vsel %vm53, %v35, 0
    %v129 = vsel %vm53, %v36, 0
    %131 = vmatprep.subr.bf16.mxu0 0
    %132 = vmatpush1.bf16.msra.mxu0 %v121
    %133 = vmatprep.subr.bf16.mxu0 0
    %134 = vmatpush1.bf16.msra.mxu0 %v122
    %135 = vmatprep.subr.bf16.mxu0 0
    %136 = vmatpush1.bf16.msra.mxu0 0
    %137 = vmatprep.subr.bf16.mxu0 0
    %138 = vmatpush1.bf16.msra.mxu0 0
    %139 = vmatprep.subr.bf16.mxu0 0
    %140 = vmatpush1.bf16.msra.mxu0 0
    %141 = vmatprep.subr.bf16.mxu0 0
    %142 = vmatpush1.bf16.msra.mxu0 0
    %143 = vmatprep.subr.bf16.mxu0 0
    %144 = vmatpush1.bf16.msra.mxu0 0
    %145 = vmatprep.subr.bf16.mxu0 0
    %146 = vmatpush1.bf16.msra.mxu0 0
    %147 = vmatprep.subr.bf16.mxu0 0
    %148 = vmatpush1.bf16.msra.mxu0 0
    %149 = vmatprep.subr.bf16.mxu0 0
    %150 = vmatpush1.bf16.msra.mxu0 0
    %151 = vmatprep.subr.bf16.mxu0 0
    %152 = vmatpush1.bf16.msra.mxu0 0
    %153 = vmatprep.subr.bf16.mxu0 0
    %154 = vmatpush1.bf16.msra.mxu0 0
    %155 = vmatprep.subr.bf16.mxu0 0
    %156 = vmatpush1.bf16.msra.mxu0 0
    %157 = vmatprep.subr.bf16.mxu0 0
    %158 = vmatpush1.bf16.msra.mxu0 0
    %159 = vmatprep.subr.bf16.mxu0 0
    %160 = vmatpush1.bf16.msra.mxu0 0
    %161 = vmatprep.subr.bf16.mxu0 0
    %162 = vmatpush1.bf16.msra.mxu0 0
    %163 = vmatprep.mubr.bf16.mxu0 0
    %164 = vmatmul.mubr.bf16.gmra.mrb[0].mxu0 %v126
    %v165 = vpop.f32.mrb[0].mxu0
    %v166 = vadd.f32 0.0, %v165
    %v167 = vpop.f32.mrb[0].mxu0
    %v168 = vpop.f32.mrb[0].mxu0
    %v169 = vadd.f32 0.0, %v168
    %v170 = vpop.f32.mrb[0].mxu0
    %171 = vmatprep.mubr.bf16.mxu0 0
    %172 = vmatmul.mubr.bf16.gmra.mrb[0].mxu0 %v129
    %v173 = vpop.f32.mrb[0].mxu0
    %v174 = vadd.f32 0.0, %v173
    %v175 = vpop.f32.mrb[0].mxu0
    %v176 = vpop.f32.mrb[0].mxu0
    %v177 = vadd.f32 0.0, %v176
    %v178 = vpop.f32.mrb[0].mxu0
    %179 = vdwg.mxu0
    %v180 = vpack.c.bf16 %v98, %v95
    %v181 = vpack.c.bf16 %v106, %v103
    %v182 = vpack.c.bf16 %v169, %v166
    %v183 = vpack.c.bf16 %v177, %v174
    %v185 = vsel %vm53, %v180, 0
    %v188 = vsel %vm53, %v182, 0
    %190 = vmatprep.subr.bf16.mxu0 0
    %191 = vmatpush1.bf16.xpose.msra.mxu0 %v188
    %192 = vmatprep.subr.bf16.mxu0 0
    %193 = vmatpush1.bf16.xpose.msra.mxu0 0
    %194 = vmatprep.subr.bf16.mxu0 0
    %195 = vmatpush1.bf16.xpose.msra.mxu0 0
    %196 = vmatprep.subr.bf16.mxu0 0
    %197 = vmatpush1.bf16.xpose.msra.mxu0 0
    %198 = vmatprep.subr.bf16.mxu0 0
    %199 = vmatpush1.bf16.xpose.msra.mxu0 0
    %200 = vmatprep.subr.bf16.mxu0 0
    %201 = vmatpush1.bf16.xpose.msra.mxu0 0
    %202 = vmatprep.subr.bf16.mxu0 0
    %203 = vmatpush1.bf16.xpose.msra.mxu0 0
    %204 = vmatprep.subr.bf16.mxu0 0
    %205 = vmatpush1.bf16.xpose.msra.mxu0 0
    %206 = vmatprep.subr.bf16.mxu0 0
    %207 = vmatpush1.bf16.xpose.msra.mxu0 0
    %208 = vmatprep.subr.bf16.mxu0 0
    %209 = vmatpush1.bf16.xpose.msra.mxu0 0
    %210 = vmatprep.subr.bf16.mxu0 0
    %211 = vmatpush1.bf16.xpose.msra.mxu0 0
    %212 = vmatprep.subr.bf16.mxu0 0
    %213 = vmatpush1.bf16.xpose.msra.mxu0 0
    %214 = vmatprep.subr.bf16.mxu0 0
    %215 = vmatpush1.bf16.xpose.msra.mxu0 0
    %216 = vmatprep.subr.bf16.mxu0 0
    %217 = vmatpush1.bf16.xpose.msra.mxu0 0
    %218 = vmatprep.subr.bf16.mxu0 0
    %219 = vmatpush1.bf16.xpose.msra.mxu0 0
    %220 = vmatprep.subr.bf16.mxu0 0
    %221 = vmatpush1.bf16.xpose.msra.mxu0 0
    %222 = vmatprep.mubr.bf16.mxu0 0
    %223 = vmatmul.mubr.bf16.gmra.mrb[0].mxu0 %v185
    %v224 = vpop.f32.mrb[0].mxu0
    %v225 = vadd.f32 0.0, %v224
    %v226 = vpop.f32.mrb[0].mxu0
    %v227 = vpop.f32.mrb[0].mxu0
    %v228 = vadd.f32 0.0, %v227
    %v229 = vpop.f32.mrb[0].mxu0
    %230 = vdwg.mxu0
    %v232 = vsel %vm53, %v181, 0
    %v235 = vsel %vm53, %v183, 0
    %237 = vmatprep.subr.bf16.mxu0 0
    %238 = vmatpush1.bf16.xpose.msra.mxu0 %v235
    %239 = vmatprep.subr.bf16.mxu0 0
    %240 = vmatpush1.bf16.xpose.msra.mxu0 0
    %241 = vmatprep.subr.bf16.mxu0 0
    %242 = vmatpush1.bf16.xpose.msra.mxu0 0
    %243 = vmatprep.subr.bf16.mxu0 0
    %244 = vmatpush1.bf16.xpose.msra.mxu0 0
    %245 = vmatprep.subr.bf16.mxu0 0
    %246 = vmatpush1.bf16.xpose.msra.mxu0 0
    %247 = vmatprep.subr.bf16.mxu0 0
    %248 = vmatpush1.bf16.xpose.msra.mxu0 0
    %249 = vmatprep.subr.bf16.mxu0 0
    %250 = vmatpush1.bf16.xpose.msra.mxu0 0
    %251 = vmatprep.subr.bf16.mxu0 0
    %252 = vmatpush1.bf16.xpose.msra.mxu0 0
    %253 = vmatprep.subr.bf16.mxu0 0
    %254 = vmatpush1.bf16.xpose.msra.mxu0 0
    %255 = vmatprep.subr.bf16.mxu0 0
    %256 = vmatpush1.bf16.xpose.msra.mxu0 0
    %257 = vmatprep.subr.bf16.mxu0 0
    %258 = vmatpush1.bf16.xpose.msra.mxu0 0
    %259 = vmatprep.subr.bf16.mxu0 0
    %260 = vmatpush1.bf16.xpose.msra.mxu0 0
    %261 = vmatprep.subr.bf16.mxu0 0
    %262 = vmatpush1.bf16.xpose.msra.mxu0 0
    %263 = vmatprep.subr.bf16.mxu0 0
    %264 = vmatpush1.bf16.xpose.msra.mxu0 0
    %265 = vmatprep.subr.bf16.mxu0 0
    %266 = vmatpush1.bf16.xpose.msra.mxu0 0
    %267 = vmatprep.subr.bf16.mxu0 0
    %268 = vmatpush1.bf16.xpose.msra.mxu0 0
    %269 = vmatprep.mubr.bf16.mxu0 0
    %270 = vmatmul.mubr.bf16.gmra.mrb[0].mxu0 %v232
    %v271 = vpop.f32.mrb[0].mxu0
    %v272 = vadd.f32 0.0, %v271
    %v273 = vpop.f32.mrb[0].mxu0
    %v274 = vpop.f32.mrb[0].mxu0
    %v275 = vadd.f32 0.0, %v274
    %v276 = vpop.f32.mrb[0].mxu0
    %277 = vdwg.mxu0
    %v278 = vmul.f32 %v225, 0.17677669
    %v279 = vmul.f32 %v228, 0.17677669
    %v280 = vmul.f32 %v272, 0.17677669
    %v281 = vmul.f32 %v275, 0.17677669
    %vm282 = vcmask 130048
    %v283 = vsel %vm282, %v278, -inf
    %284 = vmax.xlane.f32.xlu0 %v283
    %v285 = vpop.xlane.xlu0 %284
    %v286 = vsel %vm282, %v279, -inf
    %287 = vmax.xlane.f32.xlu0 %v286
    %v288 = vpop.xlane.xlu0 %287
    %v289 = vsel %vm282, %v280, -inf
    %290 = vmax.xlane.f32.xlu0 %v289
    %v291 = vpop.xlane.xlu0 %290
    %v292 = vsel %vm282, %v281, -inf
    %293 = vmax.xlane.f32.xlu0 %v292
    %v294 = vpop.xlane.xlu0 %293
    %v295 = vsub.f32 %v278, %v285
    %v296 = vsub.f32 %v279, %v288
    %v297 = vsub.f32 %v280, %v291
    %v298 = vsub.f32 %v281, %v294
    %v299 = vmul.f32 %v295, 1.442695
    %v300 = vpow.pop %v299
    %v301 = vmul.f32 %v296, 1.442695
    %v302 = vpow.pop %v301
    %v303 = vmul.f32 %v297, 1.442695
    %v304 = vpow.pop %v303
    %v305 = vmul.f32 %v298, 1.442695
    %v306 = vpow.pop %v305
    %v307 = vpack.c.bf16 %v302, %v300
    %v308 = vpack.c.bf16 %v306, %v304
    %310 = vrot.lane.b32.xlu0 %v182, 96
    %v311 = vpop.permute.xlu0 %310
    %v314 = vsel %vm282, %v307, 0
    %316 = vmatprep.subr.bf16.mxu0 0
    %317 = vmatpush1.bf16.msra.mxu0 %v311
    %318 = vmatprep.subr.bf16.mxu0 0
    %319 = vmatpush1.bf16.msra.mxu0 0
    %320 = vmatprep.subr.bf16.mxu0 0
    %321 = vmatpush1.bf16.msra.mxu0 0
    %322 = vmatprep.subr.bf16.mxu0 0
    %323 = vmatpush1.bf16.msra.mxu0 0
    %324 = vmatprep.subr.bf16.mxu0 0
    %325 = vmatpush1.bf16.msra.mxu0 0
    %326 = vmatprep.subr.bf16.mxu0 0
    %327 = vmatpush1.bf16.msra.mxu0 0
    %328 = vmatprep.subr.bf16.mxu0 0
    %329 = vmatpush1.bf16.msra.mxu0 0
    %330 = vmatprep.subr.bf16.mxu0 0
    %331 = vmatpush1.bf16.msra.mxu0 0
    %332 = vmatprep.subr.bf16.mxu0 0
    %333 = vmatpush1.bf16.msra.mxu0 0
    %334 = vmatprep.subr.bf16.mxu0 0
    %335 = vmatpush1.bf16.msra.mxu0 0
    %336 = vmatprep.subr.bf16.mxu0 0
    %337 = vmatpush1.bf16.msra.mxu0 0
    %338 = vmatprep.subr.bf16.mxu0 0
    %339 = vmatpush1.bf16.msra.mxu0 0
    %340 = vmatprep.subr.bf16.mxu0 0
    %341 = vmatpush1.bf16.msra.mxu0 0
    %342 = vmatprep.subr.bf16.mxu0 0
    %343 = vmatpush1.bf16.msra.mxu0 0
    %344 = vmatprep.subr.bf16.mxu0 0
    %345 = vmatpush1.bf16.msra.mxu0 0
    %346 = vmatprep.subr.bf16.mxu0 0
    %347 = vmatpush1.bf16.msra.mxu0 0
    %348 = vmatprep.mubr.bf16.mxu0 0
    %349 = vmatmul.mubr.bf16.gmra.mrb[0].mxu0 %v314
    %v350 = vpop.f32.mrb[0].mxu0
    %v351 = vadd.f32 0.0, %v350
    %v352 = vpop.f32.mrb[0].mxu0
    %v353 = vpop.f32.mrb[0].mxu0
    %v354 = vadd.f32 0.0, %v353
    %v355 = vpop.f32.mrb[0].mxu0
    %356 = vdwg.mxu0
    %358 = vrot.lane.b32.xlu0 %v183, 96
    %v359 = vpop.permute.xlu0 %358
    %v362 = vsel %vm282, %v308, 0
    %364 = vmatprep.subr.bf16.mxu0 0
    %365 = vmatpush1.bf16.msra.mxu0 %v359
    %366 = vmatprep.subr.bf16.mxu0 0
    %367 = vmatpush1.bf16.msra.mxu0 0
    %368 = vmatprep.subr.bf16.mxu0 0
    %369 = vmatpush1.bf16.msra.mxu0 0
    %370 = vmatprep.subr.bf16.mxu0 0
    %371 = vmatpush1.bf16.msra.mxu0 0
    %372 = vmatprep.subr.bf16.mxu0 0
    %373 = vmatpush1.bf16.msra.mxu0 0
    %374 = vmatprep.subr.bf16.mxu0 0
    %375 = vmatpush1.bf16.msra.mxu0 0
    %376 = vmatprep.subr.bf16.mxu0 0
    %377 = vmatpush1.bf16.msra.mxu0 0
    %378 = vmatprep.subr.bf16.mxu0 0
    %379 = vmatpush1.bf16.msra.mxu0 0
    %380 = vmatprep.subr.bf16.mxu0 0
    %381 = vmatpush1.bf16.msra.mxu0 0
    %382 = vmatprep.subr.bf16.mxu0 0
    %383 = vmatpush1.bf16.msra.mxu0 0
    %384 = vmatprep.subr.bf16.mxu0 0
    %385 = vmatpush1.bf16.msra.mxu0 0
    %386 = vmatprep.subr.bf16.mxu0 0
    %387 = vmatpush1.bf16.msra.mxu0 0
    %388 = vmatprep.subr.bf16.mxu0 0
    %389 = vmatpush1.bf16.msra.mxu0 0
    %390 = vmatprep.subr.bf16.mxu0 0
    %391 = vmatpush1.bf16.msra.mxu0 0
    %392 = vmatprep.subr.bf16.mxu0 0
    %393 = vmatpush1.bf16.msra.mxu0 0
    %394 = vmatprep.subr.bf16.mxu0 0
    %395 = vmatpush1.bf16.msra.mxu0 0
    %396 = vmatprep.mubr.bf16.mxu0 0
    %397 = vmatmul.mubr.bf16.gmra.mrb[0].mxu0 %v362
    %v398 = vpop.f32.mrb[0].mxu0
    %v399 = vadd.f32 0.0, %v398
    %v400 = vpop.f32.mrb[0].mxu0
    %v401 = vpop.f32.mrb[0].mxu0
    %v402 = vadd.f32 0.0, %v401
    %v403 = vpop.f32.mrb[0].mxu0
    %404 = vdwg.mxu0
    %v405 = vsel %vm282, %v300, 0.0
    %406 = vadd.xlane.f32.xlu0 %v405
    %v407 = vpop.xlane.xlu0 %406
    %v408 = vsel %vm282, %v302, 0.0
    %409 = vadd.xlane.f32.xlu0 %v408
    %v410 = vpop.xlane.xlu0 %409
    %v411 = vsel %vm282, %v304, 0.0
    %412 = vadd.xlane.f32.xlu0 %v411
    %v413 = vpop.xlane.xlu0 %412
    %v414 = vsel %vm282, %v306, 0.0
    %415 = vadd.xlane.f32.xlu0 %v414
    %v416 = vpop.xlane.xlu0 %415
    %v417 = vrcp.pop %v407
    %v418 = vrcp.pop %v410
    %v419 = vrcp.pop %v413
    %v420 = vrcp.pop %v416
    %v421 = vmul.f32 %v351, %v417
    %v422 = vmul.f32 %v354, %v418
    %v423 = vmul.f32 %v399, %v419
    %v424 = vmul.f32 %v402, %v420
    %v425 = vmul.f32 %v29, 0.5
    %v426 = vmul.f32 %v30, 0.5
    %v427 = vmul.f32 %v31, 0.5
    %v428 = vmul.f32 %v32, 0.5
    %v429 = vadd.f32 %v421, %v425
    %v430 = vadd.f32 %v422, %v426
    %v431 = vadd.f32 %v423, %v427
    %v432 = vadd.f32 %v424, %v428
    %v433 = vsel %vm53, %v429, 0.0
    %434 = vadd.xlane.f32.xlu0 %v433
    %v435 = vpop.xlane.xlu0 %434
    %v436 = vsel %vm53, %v430, 0.0
    %437 = vadd.xlane.f32.xlu0 %v436
    %v438 = vpop.xlane.xlu0 %437
    %v439 = vsel %vm53, %v431, 0.0
    %440 = vadd.xlane.f32.xlu0 %v439
    %v441 = vpop.xlane.xlu0 %440
    %v442 = vsel %vm53, %v432, 0.0
    %443 = vadd.xlane.f32.xlu0 %v442
    %v444 = vpop.xlane.xlu0 %443
    %v445 = vrcp.pop 32.0
    %v446 = vmul.f32 %v435, %v445
    %v447 = vmul.f32 %v438, %v445
    %v448 = vmul.f32 %v441, %v445
    %v449 = vmul.f32 %v444, %v445
    %v450 = vmul.f32 %v429, %v429
    %v451 = vmul.f32 %v430, %v430
    %v452 = vmul.f32 %v431, %v431
    %v453 = vmul.f32 %v432, %v432
    %v454 = vsel %vm53, %v450, 0.0
    %455 = vadd.xlane.f32.xlu0 %v454
    %v456 = vpop.xlane.xlu0 %455
    %v457 = vsel %vm53, %v451, 0.0
    %458 = vadd.xlane.f32.xlu0 %v457
    %v459 = vpop.xlane.xlu0 %458
    %v460 = vsel %vm53, %v452, 0.0
    %461 = vadd.xlane.f32.xlu0 %v460
    %v462 = vpop.xlane.xlu0 %461
    %v463 = vsel %vm53, %v453, 0.0
    %464 = vadd.xlane.f32.xlu0 %v463
    %v465 = vpop.xlane.xlu0 %464
    %v466 = vmul.f32 %v456, %v445
    %v467 = vmul.f32 %v459, %v445
    %v468 = vmul.f32 %v462, %v445
    %v469 = vmul.f32 %v465, %v445
    %v470 = vmul.f32 %v446, %v446
    %v471 = vmul.f32 %v447, %v447
    %v472 = vmul.f32 %v448, %v448
    %v473 = vmul.f32 %v449, %v449
    %v474 = vsub.f32 %v466, %v470
    %v475 = vsub.f32 %v467, %v471
    %v476 = vsub.f32 %v468, %v472
    %v477 = vsub.f32 %v469, %v473
    %v478 = vsub.f32 %v429, %v446
    %v479 = vsub.f32 %v430, %v447
    %v480 = vsub.f32 %v431, %v448
    %v481 = vsub.f32 %v432, %v449
    %v482 = vadd.f32 %v474, 1e-12
    %v483 = vadd.f32 %v475, 1e-12
    %v484 = vadd.f32 %v476, 1e-12
    %v485 = vadd.f32 %v477, 1e-12
    %v486 = vrsqrt.pop %v482
    %v487 = vrsqrt.pop %v483
    %v488 = vrsqrt.pop %v484
    %v489 = vrsqrt.pop %v485
    %v490 = vmul.f32 %v478, %v486
    %v491 = vmul.f32 %v479, %v487
    %v492 = vmul.f32 %v480, %v488
    %v493 = vmul.f32 %v481, %v489
    %v494 = vcombine.high %v490, 0.0
    %v496 = vunpack.c.l.s4 1983009808
    %v497 = vunpack.c.0.s8 %v496
    %v498 = vlaneseq
    %v499 = vshrl.u32 %v498, 7
    %v500 = vsub.s32 %v497, %v499
    %v501 = vrot.slane %v490, %v500
    %v503 = vunpack.c.l.s4 1983009808
    %v504 = vunpack.c.0.s8 %v503
    %v505 = vlaneseq
    %v506 = vshrl.u32 %v505, 7
    %v507 = vsub.s32 %v504, %v506
    %v508 = vrot.slane %v494, %v507
    %v509 = vcombine.high %v492, 0.0
    %v511 = vunpack.c.l.s4 1983009808
    %v512 = vunpack.c.0.s8 %v511
    %v513 = vlaneseq
    %v514 = vshrl.u32 %v513, 7
    %v515 = vsub.s32 %v512, %v514
    %v516 = vrot.slane %v492, %v515
    %v518 = vunpack.c.l.s4 1983009808
    %v519 = vunpack.c.0.s8 %v518
    %v520 = vlaneseq
    %v521 = vshrl.u32 %v520, 7
    %v522 = vsub.s32 %v519, %v521
    %v523 = vrot.slane %v509, %v522
    %v524 = vcombine.low %v501, %v516
    %v525 = vcombine.high %v501, %v516
    %v527 = vunpack.c.l.s4 1934713408
    %v528 = vunpack.c.0.s8 %v527
    %v529 = vlaneseq
    %v530 = vshrl.u32 %v529, 7
    %v531 = vsub.s32 %v528, %v530
    %v532 = vrot.slane %v524, %v531
    %v534 = vunpack.c.l.s4 1934713408
    %v535 = vunpack.c.0.s8 %v534
    %v536 = vlaneseq
    %v537 = vshrl.u32 %v536, 7
    %v538 = vsub.s32 %v535, %v537
    %v539 = vrot.slane %v525, %v538
    %v540 = vcombine.low %v508, %v523
    %v541 = vcombine.high %v508, %v523
    %v543 = vunpack.c.l.s4 1934713408
    %v544 = vunpack.c.0.s8 %v543
    %v545 = vlaneseq
    %v546 = vshrl.u32 %v545, 7
    %v547 = vsub.s32 %v544, %v546
    %v548 = vrot.slane %v540, %v547
    %v550 = vunpack.c.l.s4 1934713408
    %v551 = vunpack.c.0.s8 %v550
    %v552 = vlaneseq
    %v553 = vshrl.u32 %v552, 7
    %v554 = vsub.s32 %v551, %v553
    %v555 = vrot.slane %v541, %v554
    %v556 = vcombine.high %v532, 0.0
    %v557 = vcombine.high %v539, 0.0
    %v558 = vcombine.high %v548, 0.0
    %v559 = vcombine.high %v555, 0.0
    %v560 = vcombine.high %v491, 0.0
    %v562 = vunpack.c.l.s4 1983009808
    %v563 = vunpack.c.0.s8 %v562
    %v564 = vlaneseq
    %v565 = vshrl.u32 %v564, 7
    %v566 = vsub.s32 %v563, %v565
    %v567 = vrot.slane %v491, %v566
    %v569 = vunpack.c.l.s4 1983009808
    %v570 = vunpack.c.0.s8 %v569
    %v571 = vlaneseq
    %v572 = vshrl.u32 %v571, 7
    %v573 = vsub.s32 %v570, %v572
    %v574 = vrot.slane %v560, %v573
    %v575 = vcombine.high %v493, 0.0
    %v577 = vunpack.c.l.s4 1983009808
    %v578 = vunpack.c.0.s8 %v577
    %v579 = vlaneseq
    %v580 = vshrl.u32 %v579, 7
    %v581 = vsub.s32 %v578, %v580
    %v582 = vrot.slane %v493, %v581
    %v584 = vunpack.c.l.s4 1983009808
    %v585 = vunpack.c.0.s8 %v584
    %v586 = vlaneseq
    %v587 = vshrl.u32 %v586, 7
    %v588 = vsub.s32 %v585, %v587
    %v589 = vrot.slane %v575, %v588
    %v590 = vcombine.low %v567, %v582
    %v591 = vcombine.high %v567, %v582
    %v593 = vunpack.c.l.s4 1934713408
    %v594 = vunpack.c.0.s8 %v593
    %v595 = vlaneseq
    %v596 = vshrl.u32 %v595, 7
    %v597 = vsub.s32 %v594, %v596
    %v598 = vrot.slane %v590, %v597
    %v600 = vunpack.c.l.s4 1934713408
    %v601 = vunpack.c.0.s8 %v600
    %v602 = vlaneseq
    %v603 = vshrl.u32 %v602, 7
    %v604 = vsub.s32 %v601, %v603
    %v605 = vrot.slane %v591, %v604
    %v606 = vcombine.low %v574, %v589
    %v607 = vcombine.high %v574, %v589
    %v609 = vunpack.c.l.s4 1934713408
    %v610 = vunpack.c.0.s8 %v609
    %v611 = vlaneseq
    %v612 = vshrl.u32 %v611, 7
    %v613 = vsub.s32 %v610, %v612
    %v614 = vrot.slane %v606, %v613
    %v616 = vunpack.c.l.s4 1934713408
    %v617 = vunpack.c.0.s8 %v616
    %v618 = vlaneseq
    %v619 = vshrl.u32 %v618, 7
    %v620 = vsub.s32 %v617, %v619
    %v621 = vrot.slane %v607, %v620
    %v622 = vcombine.high %v598, 0.0
    %v623 = vcombine.high %v605, 0.0
    %v624 = vcombine.high %v614, 0.0
    %v625 = vcombine.high %v621, 0.0
    %627 = vrot.lane.b32.xlu0 %v556, 32
    %v628 = vpop.permute.xlu0 %627
    %631 = vrot.lane.b32.xlu0 %v539, 64
    %v632 = vpop.permute.xlu0 %631
    %635 = vrot.lane.b32.xlu0 %v557, 96
    %v636 = vpop.permute.xlu0 %635
    %639 = vrot.lane.b32.xlu0 %v558, 32
    %v640 = vpop.permute.xlu0 %639
    %643 = vrot.lane.b32.xlu0 %v555, 64
    %v644 = vpop.permute.xlu0 %643
    %647 = vrot.lane.b32.xlu0 %v559, 96
    %v648 = vpop.permute.xlu0 %647
    %651 = vrot.lane.b32.xlu0 %v622, 32
    %v652 = vpop.permute.xlu0 %651
    %655 = vrot.lane.b32.xlu0 %v605, 64
    %v656 = vpop.permute.xlu0 %655
    %659 = vrot.lane.b32.xlu0 %v623, 96
    %v660 = vpop.permute.xlu0 %659
    %663 = vrot.lane.b32.xlu0 %v624, 32
    %v664 = vpop.permute.xlu0 %663
    %667 = vrot.lane.b32.xlu0 %v621, 64
    %v668 = vpop.permute.xlu0 %667
    %671 = vrot.lane.b32.xlu0 %v625, 96
    %v672 = vpop.permute.xlu0 %671
    %v674 = vsel %vm53, %v532, %v628
    %vm675 = vcmask 523264
    %v676 = vsel %vm675, %v674, %v632
    %vm677 = vcmask 785408
    %v678 = vsel %vm677, %v676, %v636
    %v679 = vsel %vm53, %v548, %v640
    %v680 = vsel %vm675, %v679, %v644
    %v681 = vsel %vm677, %v680, %v648
    %v682 = vsel %vm53, %v598, %v652
    %v683 = vsel %vm675, %v682, %v656
    %v684 = vsel %vm677, %v683, %v660
    %v685 = vsel %vm53, %v614, %v664
    %v686 = vsel %vm675, %v685, %v668
    %v687 = vsel %vm677, %v686, %v672
    %v688 = vpack.c.bf16 %v678, %v678
    %v689 = vpack.c.bf16 %v681, %v681
    %v690 = vpack.c.bf16 %v684, %v684
    %v691 = vpack.c.bf16 %v687, %v687
    %v692 = vld [vmem:[%s4] sm:$0xf]
    %v693 = vld [vmem:[%s4 + $0x4] sm:$0xf]
    %v694 = vld [vmem:[%s4 + $0x8] sm:$0xf]
    %v695 = vld [vmem:[%s4 + $0xc] sm:$0xf]
    %v696 = vld [vmem:[%s4 + $0x10] sm:$0xf]
    %v697 = vld [vmem:[%s4 + $0x14] sm:$0xf]
    %v698 = vld [vmem:[%s4 + $0x18] sm:$0xf]
    %v699 = vld [vmem:[%s4 + $0x1c] sm:$0xf]
    %v700 = vld [vmem:[%s4 + $0x20] sm:$0xf]
    %v701 = vld [vmem:[%s4 + $0x24] sm:$0xf]
    %v702 = vld [vmem:[%s4 + $0x28] sm:$0xf]
    %v703 = vld [vmem:[%s4 + $0x2c] sm:$0xf]
    %v704 = vld [vmem:[%s4 + $0x30] sm:$0xf]
    %v705 = vld [vmem:[%s4 + $0x34] sm:$0xf]
    %v706 = vld [vmem:[%s4 + $0x38] sm:$0xf]
    %v707 = vld [vmem:[%s4 + $0x3c] sm:$0xf]
    %v708 = vld [vmem:[%s4 + $0x40] sm:$0xf]
    %v709 = vld [vmem:[%s4 + $0x44] sm:$0xf]
    %v710 = vld [vmem:[%s4 + $0x48] sm:$0xf]
    %v711 = vld [vmem:[%s4 + $0x4c] sm:$0xf]
    %v712 = vld [vmem:[%s4 + $0x50] sm:$0xf]
    %v713 = vld [vmem:[%s4 + $0x54] sm:$0xf]
    %v714 = vld [vmem:[%s4 + $0x58] sm:$0xf]
    %v715 = vld [vmem:[%s4 + $0x5c] sm:$0xf]
    %v716 = vld [vmem:[%s4 + $0x60] sm:$0xf]
    %v717 = vld [vmem:[%s4 + $0x64] sm:$0xf]
    %v718 = vld [vmem:[%s4 + $0x68] sm:$0xf]
    %v719 = vld [vmem:[%s4 + $0x6c] sm:$0xf]
    %v720 = vld [vmem:[%s4 + $0x70] sm:$0xf]
    %v721 = vld [vmem:[%s4 + $0x74] sm:$0xf]
    %v722 = vld [vmem:[%s4 + $0x78] sm:$0xf]
    %v723 = vld [vmem:[%s4 + $0x7c] sm:$0xf]
    %v724 = vld [vmem:[%s4 + $0x80] sm:$0xf]
    %v725 = vld [vmem:[%s4 + $0x84] sm:$0xf]
    %v726 = vld [vmem:[%s4 + $0x88] sm:$0xf]
    %v727 = vld [vmem:[%s4 + $0x8c] sm:$0xf]
    %v728 = vld [vmem:[%s4 + $0x90] sm:$0xf]
    %v729 = vld [vmem:[%s4 + $0x94] sm:$0xf]
    %v730 = vld [vmem:[%s4 + $0x98] sm:$0xf]
    %v731 = vld [vmem:[%s4 + $0x9c] sm:$0xf]
    %v732 = vld [vmem:[%s4 + $0xa0] sm:$0xf]
    %v733 = vld [vmem:[%s4 + $0xa4] sm:$0xf]
    %v734 = vld [vmem:[%s4 + $0xa8] sm:$0xf]
    %v735 = vld [vmem:[%s4 + $0xac] sm:$0xf]
    %v736 = vld [vmem:[%s4 + $0xb0] sm:$0xf]
    %v737 = vld [vmem:[%s4 + $0xb4] sm:$0xf]
    %v738 = vld [vmem:[%s4 + $0xb8] sm:$0xf]
    %v739 = vld [vmem:[%s4 + $0xbc] sm:$0xf]
    %v740 = vld [vmem:[%s4 + $0xc0] sm:$0xf]
    %v741 = vld [vmem:[%s4 + $0xc4] sm:$0xf]
    %v742 = vld [vmem:[%s4 + $0xc8] sm:$0xf]
    %v743 = vld [vmem:[%s4 + $0xcc] sm:$0xf]
    %v744 = vld [vmem:[%s4 + $0xd0] sm:$0xf]
    %v745 = vld [vmem:[%s4 + $0xd4] sm:$0xf]
    %v746 = vld [vmem:[%s4 + $0xd8] sm:$0xf]
    %v747 = vld [vmem:[%s4 + $0xdc] sm:$0xf]
    %v748 = vld [vmem:[%s4 + $0xe0] sm:$0xf]
    %v749 = vld [vmem:[%s4 + $0xe4] sm:$0xf]
    %v750 = vld [vmem:[%s4 + $0xe8] sm:$0xf]
    %v751 = vld [vmem:[%s4 + $0xec] sm:$0xf]
    %v752 = vld [vmem:[%s4 + $0xf0] sm:$0xf]
    %v753 = vld [vmem:[%s4 + $0xf4] sm:$0xf]
    %v754 = vld [vmem:[%s4 + $0xf8] sm:$0xf]
    %v755 = vld [vmem:[%s4 + $0xfc] sm:$0xf]
    %v756 = vld [vmem:[%s5] sm:$0x1]
    %v758 = vlaneseq
    %v759 = vshrl.u32 %v758, 7
    %v760 = vsub.s32 0, %v759
    %v761 = vrot.slane %v756, %v760
    %v827 = vunpack.c.l.b16 %v692
    %v828 = vunpack.c.l.b16 %v693
    %v829 = vunpack.c.l.b16 %v694
    %v830 = vunpack.c.l.b16 %v695
    %v831 = vunpack.c.l.b16 %v696
    %v832 = vunpack.c.l.b16 %v697
    %v833 = vunpack.c.l.b16 %v698
    %v834 = vunpack.c.l.b16 %v699
    %v835 = vunpack.c.l.b16 %v700
    %v836 = vunpack.c.l.b16 %v701
    %v837 = vunpack.c.l.b16 %v702
    %v838 = vunpack.c.l.b16 %v703
    %v839 = vunpack.c.l.b16 %v704
    %v840 = vunpack.c.l.b16 %v705
    %v841 = vunpack.c.l.b16 %v706
    %v842 = vunpack.c.l.b16 %v707
    %v843 = vunpack.c.l.b16 %v708
    %v844 = vunpack.c.l.b16 %v709
    %v845 = vunpack.c.l.b16 %v710
    %v846 = vunpack.c.l.b16 %v711
    %v847 = vunpack.c.l.b16 %v712
    %v848 = vunpack.c.l.b16 %v713
    %v849 = vunpack.c.l.b16 %v714
    %v850 = vunpack.c.l.b16 %v715
    %v851 = vunpack.c.l.b16 %v716
    %v852 = vunpack.c.l.b16 %v717
    %v853 = vunpack.c.l.b16 %v718
    %v854 = vunpack.c.l.b16 %v719
    %v855 = vunpack.c.l.b16 %v720
    %v856 = vunpack.c.l.b16 %v721
    %v857 = vunpack.c.l.b16 %v722
    %v858 = vunpack.c.l.b16 %v723
    %v859 = vunpack.c.l.b16 %v724
    %v860 = vunpack.c.l.b16 %v725
    %v861 = vunpack.c.l.b16 %v726
    %v862 = vunpack.c.l.b16 %v727
    %v863 = vunpack.c.l.b16 %v728
    %v864 = vunpack.c.l.b16 %v729
    %v865 = vunpack.c.l.b16 %v730
    %v866 = vunpack.c.l.b16 %v731
    %v867 = vunpack.c.l.b16 %v732
    %v868 = vunpack.c.l.b16 %v733
    %v869 = vunpack.c.l.b16 %v734
    %v870 = vunpack.c.l.b16 %v735
    %v871 = vunpack.c.l.b16 %v736
    %v872 = vunpack.c.l.b16 %v737
    %v873 = vunpack.c.l.b16 %v738
    %v874 = vunpack.c.l.b16 %v739
    %v875 = vunpack.c.l.b16 %v740
    %v876 = vunpack.c.l.b16 %v741
    %v877 = vunpack.c.l.b16 %v742
    %v878 = vunpack.c.l.b16 %v743
    %v879 = vunpack.c.l.b16 %v744
    %v880 = vunpack.c.l.b16 %v745
    %v881 = vunpack.c.l.b16 %v746
    %v882 = vunpack.c.l.b16 %v747
    %v883 = vunpack.c.l.b16 %v748
    %v884 = vunpack.c.l.b16 %v749
    %v885 = vunpack.c.l.b16 %v750
    %v886 = vunpack.c.l.b16 %v751
    %v887 = vunpack.c.l.b16 %v752
    %v888 = vunpack.c.l.b16 %v753
    %v889 = vunpack.c.l.b16 %v754
    %v890 = vunpack.c.l.b16 %v755
    %v891 = vpack.c.b16 %v828, %v827
    %v892 = vpack.c.b16 %v830, %v829
    %v893 = vpack.c.b16 %v832, %v831
    %v894 = vpack.c.b16 %v834, %v833
    %v895 = vpack.c.b16 %v836, %v835
    %v896 = vpack.c.b16 %v838, %v837
    %v897 = vpack.c.b16 %v840, %v839
    %v898 = vpack.c.b16 %v842, %v841
    %v899 = vpack.c.b16 %v844, %v843
    %v900 = vpack.c.b16 %v846, %v845
    %v901 = vpack.c.b16 %v848, %v847
    %v902 = vpack.c.b16 %v850, %v849
    %v903 = vpack.c.b16 %v852, %v851
    %v904 = vpack.c.b16 %v854, %v853
    %v905 = vpack.c.b16 %v856, %v855
    %v906 = vpack.c.b16 %v858, %v857
    %v907 = vpack.c.b16 %v860, %v859
    %v908 = vpack.c.b16 %v862, %v861
    %v909 = vpack.c.b16 %v864, %v863
    %v910 = vpack.c.b16 %v866, %v865
    %v911 = vpack.c.b16 %v868, %v867
    %v912 = vpack.c.b16 %v870, %v869
    %v913 = vpack.c.b16 %v872, %v871
    %v914 = vpack.c.b16 %v874, %v873
    %v915 = vpack.c.b16 %v876, %v875
    %v916 = vpack.c.b16 %v878, %v877
    %v917 = vpack.c.b16 %v880, %v879
    %v918 = vpack.c.b16 %v882, %v881
    %v919 = vpack.c.b16 %v884, %v883
    %v920 = vpack.c.b16 %v886, %v885
    %v921 = vpack.c.b16 %v888, %v887
    %v922 = vpack.c.b16 %v890, %v889
    %955 = vmatprep.subr.bf16.mxu0 0
    %956 = vmatpush1.bf16.msra.mxu0 %v891
    %957 = vmatprep.subr.bf16.mxu0 0
    %958 = vmatpush1.bf16.msra.mxu0 %v892
    %959 = vmatprep.subr.bf16.mxu0 0
    %960 = vmatpush1.bf16.msra.mxu0 %v893
    %961 = vmatprep.subr.bf16.mxu0 0
    %962 = vmatpush1.bf16.msra.mxu0 %v894
    %963 = vmatprep.subr.bf16.mxu0 0
    %964 = vmatpush1.bf16.msra.mxu0 %v895
    %965 = vmatprep.subr.bf16.mxu0 0
    %966 = vmatpush1.bf16.msra.mxu0 %v896
    %967 = vmatprep.subr.bf16.mxu0 0
    %968 = vmatpush1.bf16.msra.mxu0 %v897
    %969 = vmatprep.subr.bf16.mxu0 0
    %970 = vmatpush1.bf16.msra.mxu0 %v898
    %971 = vmatprep.subr.bf16.mxu0 0
    %972 = vmatpush1.bf16.msra.mxu0 %v899
    %973 = vmatprep.subr.bf16.mxu0 0
    %974 = vmatpush1.bf16.msra.mxu0 %v900
    %975 = vmatprep.subr.bf16.mxu0 0
    %976 = vmatpush1.bf16.msra.mxu0 %v901
    %977 = vmatprep.subr.bf16.mxu0 0
    %978 = vmatpush1.bf16.msra.mxu0 %v902
    %979 = vmatprep.subr.bf16.mxu0 0
    %980 = vmatpush1.bf16.msra.mxu0 %v903
    %981 = vmatprep.subr.bf16.mxu0 0
    %982 = vmatpush1.bf16.msra.mxu0 %v904
    %983 = vmatprep.subr.bf16.mxu0 0
    %984 = vmatpush1.bf16.msra.mxu0 %v905
    %985 = vmatprep.subr.bf16.mxu0 0
    %986 = vmatpush1.bf16.msra.mxu0 %v906
    %987 = vmatprep.mubr.bf16.mxu0 %v689
    %988 = vmatmul.mubr.bf16.gmra.mrb[0].mxu0 %v688
    %v989 = vpop.f32.mrb[0].mxu0
    %v990 = vadd.f32 %v761, %v989
    %v991 = vpop.f32.mrb[0].mxu0
    %v992 = vpop.f32.mrb[0].mxu0
    %v993 = vpop.f32.mrb[0].mxu0
    %994 = vdwg.mxu0
    %995 = vmatprep.subr.bf16.mxu0 0
    %996 = vmatpush1.bf16.msra.mxu0 %v907
    %997 = vmatprep.subr.bf16.mxu0 0
    %998 = vmatpush1.bf16.msra.mxu0 %v908
    %999 = vmatprep.subr.bf16.mxu0 0
    %1000 = vmatpush1.bf16.msra.mxu0 %v909
    %1001 = vmatprep.subr.bf16.mxu0 0
    %1002 = vmatpush1.bf16.msra.mxu0 %v910
    %1003 = vmatprep.subr.bf16.mxu0 0
    %1004 = vmatpush1.bf16.msra.mxu0 %v911
    %1005 = vmatprep.subr.bf16.mxu0 0
    %1006 = vmatpush1.bf16.msra.mxu0 %v912
    %1007 = vmatprep.subr.bf16.mxu0 0
    %1008 = vmatpush1.bf16.msra.mxu0 %v913
    %1009 = vmatprep.subr.bf16.mxu0 0
    %1010 = vmatpush1.bf16.msra.mxu0 %v914
    %1011 = vmatprep.subr.bf16.mxu0 0
    %1012 = vmatpush1.bf16.msra.mxu0 %v915
    %1013 = vmatprep.subr.bf16.mxu0 0
    %1014 = vmatpush1.bf16.msra.mxu0 %v916
    %1015 = vmatprep.subr.bf16.mxu0 0
    %1016 = vmatpush1.bf16.msra.mxu0 %v917
    %1017 = vmatprep.subr.bf16.mxu0 0
    %1018 = vmatpush1.bf16.msra.mxu0 %v918
    %1019 = vmatprep.subr.bf16.mxu0 0
    %1020 = vmatpush1.bf16.msra.mxu0 %v919
    %1021 = vmatprep.subr.bf16.mxu0 0
    %1022 = vmatpush1.bf16.msra.mxu0 %v920
    %1023 = vmatprep.subr.bf16.mxu0 0
    %1024 = vmatpush1.bf16.msra.mxu0 %v921
    %1025 = vmatprep.subr.bf16.mxu0 0
    %1026 = vmatpush1.bf16.msra.mxu0 %v922
    %1027 = vmatprep.mubr.bf16.mxu0 %v691
    %1028 = vmatmul.mubr.bf16.gmra.mrb[0].mxu0 %v690
    %v1029 = vpop.f32.mrb[0].mxu0
    %v1030 = vadd.f32 %v990, %v1029
    %v1031 = vpop.f32.mrb[0].mxu0
    %v1032 = vpop.f32.mrb[0].mxu0
    %v1033 = vpop.f32.mrb[0].mxu0
    %1034 = vdwg.mxu0
    %v1035 = vxor.u32 %v1030, 2147483648
    %v1036 = vmul.f32 %v1035, 1.442695
    %v1037 = vpow.pop %v1036
    %v1038 = vadd.f32 %v1037, 1.0
    %v1039 = vrcp.pop %v1038
    %v1040 = vmul.f32 1.0, %v1039
    %v1041 = vmul.f32 %v1030, %v1040
    %vm1042 = vcmask 517120
    %1043 = vst.msk [vmem:[#allocation2] sm:$0x3] %vm1042, %v1041
    // Predicated region
    $region26: #{tpu_custom_call.1} parent=1 // pred_check
      _
    $region27: #{tpu_custom_call.1} parent=1 // pred_check_branch
      %1045 = sbr.rel (0) target = $region29
    $region28: #{tpu_custom_call.1} parent=1 // pred_region
      %s1047 = ssub.s32 32, 32
      %1048 = vsyncadd [#allocation3], %s1047
      %s1050 = sshll.u32 [#allocation2], 4
      %s1051 = int_to_ptr.vmem [resolvable:$true] %s1050
      %1053 = dma.vmem_to_hbm [thread:$0]  %s1051, 32, %s6, [#allocation3]
    $region29: #{tpu_custom_call.1} parent=1 // pred_fallthru
      _
    // Predicated region
    $region30: #{tpu_custom_call.1} parent=1 // pred_check
      _
    $region31: #{tpu_custom_call.1} parent=1 // pred_check_branch
      %1055 = sbr.rel (0) target = $region33
    $region32: #{tpu_custom_call.1} parent=1 // pred_region
      %1056 = dma.done [#allocation3], 32
    $region33: #{tpu_custom_call.1} parent=1 // pred_fallthru
      _
    %1057 = vsyncpa [#allocation3], 1

</llo_original>
